<compile_context>
chip_gen: v6e
topology: v6e:2x2x1
jax: 0.10.0
libtpu: 0.0.40
codegen_flags: <defaults>
</compile_context>

<pallas_src>
import functools

import jax
import jax.numpy as jnp
from jax.experimental import pallas as pl
from jax.experimental.pallas import tpu as pltpu

LANE = 128  # vreg lane width; hidden / output dims are padded up to this


def _round_up(n, m):
    return ((n + m - 1) // m) * m


def ae_encoder_kernel(x_ref, w1_ref, b1_ref, w2_ref, b2_ref, out_ref):
    # h = relu(x @ w1 + b1)      (hidden dim already lane-padded to 128)
    h = jnp.dot(x_ref[...], w1_ref[...], preferred_element_type=jnp.float32)
    h = jnp.maximum(h + b1_ref[...], 0.0)
    # y = relu(h @ w2 + b2)      (output dim already lane-padded to k*128)
    y = jnp.dot(h, w2_ref[...], preferred_element_type=jnp.float32)
    out_ref[...] = jnp.maximum(y + b2_ref[...], 0.0).astype(out_ref.dtype)


@functools.partial(jax.jit, static_argnames=("block_b",))
def ae_encoder_forward(x, w1, b1, w2, b2, *, block_b=512):
    """x: [B, in] f32; w1: [in, 32]; b1: [32]; w2: [32, out]; b2: [out] -> [B, out]."""
    B, in_features = x.shape
    hidden = w1.shape[1]
    out_dim = w2.shape[1]

    # --- lane-dense zero padding (exact: padded lanes stay 0 through both relus) ---
    hid_p = _round_up(hidden, LANE)
    out_p = _round_up(out_dim, LANE)
    w1p = jnp.zeros((in_features, hid_p), jnp.float32).at[:, :hidden].set(w1)
    b1p = jnp.zeros((1, hid_p), jnp.float32).at[:, :hidden].set(b1.reshape(1, -1))
    w2p = jnp.zeros((hid_p, out_p), jnp.float32).at[:hidden, :out_dim].set(w2)
    b2p = jnp.zeros((1, out_p), jnp.float32).at[:, :out_dim].set(b2.reshape(1, -1))

    # --- batch tiling: TB rows per grid step, batch row-padded to a multiple of TB ---
    tb = min(block_b, _round_up(B, 8))
    b_pad = _round_up(B, tb)
    if b_pad != B:
        x = jnp.pad(x, ((0, b_pad - B), (0, 0)))
    grid = (b_pad // tb,)

    vmem = pltpu.MemorySpace.VMEM
    out_padded = pl.pallas_call(
        ae_encoder_kernel,
        out_shape=jax.ShapeDtypeStruct((b_pad, out_p), jnp.float32),
        grid_spec=pltpu.PrefetchScalarGridSpec(
            num_scalar_prefetch=0,
            grid=grid,
            in_specs=[
                pl.BlockSpec((tb, in_features), lambda i: (i, 0), memory_space=vmem),
                pl.BlockSpec((in_features, hid_p), lambda i: (0, 0), memory_space=vmem),
                pl.BlockSpec((1, hid_p), lambda i: (0, 0), memory_space=vmem),
                pl.BlockSpec((hid_p, out_p), lambda i: (0, 0), memory_space=vmem),
                pl.BlockSpec((1, out_p), lambda i: (0, 0), memory_space=vmem),
            ],
            out_specs=pl.BlockSpec((tb, out_p), lambda i: (i, 0), memory_space=vmem),
        ),
        compiler_params=pltpu.CompilerParams(
            dimension_semantics=("parallel",),  # v7x: 2 TCs each take half the batch grid
        ),
    )(x, w1p, b1p, w2p, b2p)

    # Slice off the batch rows and lane columns added for padding.
    return out_padded[:B, :out_dim]


def init_params(key, in_features, encoded_size, channels):
    """Deterministic PyTorch-style (Kaiming-uniform-ish) Linear init."""
    hidden = 32
    out_dim = encoded_size * channels
    k1, k2, k3, k4 = jax.random.split(key, 4)

    bound1 = 1.0 / jnp.sqrt(in_features)
    w1 = jax.random.uniform(k1, (in_features, hidden), jnp.float32, -bound1, bound1)
    b1 = jax.random.uniform(k2, (hidden,), jnp.float32, -bound1, bound1)

    bound2 = 1.0 / jnp.sqrt(hidden)
    w2 = jax.random.uniform(k3, (hidden, out_dim), jnp.float32, -bound2, bound2)
    b2 = jax.random.uniform(k4, (out_dim,), jnp.float32, -bound2, bound2)
    return w1, b1, w2, b2


def reference_forward(x, w1, b1, w2, b2):
    h = jnp.maximum(x @ w1 + b1, 0.0)
    return jnp.maximum(h @ w2 + b2, 0.0)


if __name__ == "__main__":
    # Shapes consistent with the module: in_features=64, encoded_size=24, channels=1.
    B, IN_FEATURES, ENCODED_SIZE, CHANNELS = 8, 64, 24, 1

    key = jax.random.PRNGKey(0)
    kx, kp = jax.random.split(key)
    x = jax.random.normal(kx, (B, IN_FEATURES), dtype=jnp.float32)
    w1, b1, w2, b2 = init_params(kp, IN_FEATURES, ENCODED_SIZE, CHANNELS)

    out = ae_encoder_forward(x, w1, b1, w2, b2)
    out = jax.block_until_ready(out)
    ref = reference_forward(x, w1, b1, w2, b2)
    assert out.shape == (B, ENCODED_SIZE * CHANNELS), out.shape
    assert jnp.allclose(out, ref, atol=1e-5, rtol=1e-5), "mismatch vs reference (B=8)"

    # Exercise the multi-step batch grid + batch padding path (B not a multiple of TB).
    B2 = 300
    x2 = jax.random.normal(jax.random.PRNGKey(1), (B2, IN_FEATURES), dtype=jnp.float32)
    out2 = jax.block_until_ready(ae_encoder_forward(x2, w1, b1, w2, b2, block_b=128))
    ref2 = reference_forward(x2, w1, b1, w2, b2)
    assert out2.shape == (B2, ENCODED_SIZE * CHANNELS), out2.shape
    assert jnp.allclose(out2, ref2, atol=1e-5, rtol=1e-5), "mismatch vs reference (B=300)"

    print("KERNEL_OK")
</pallas_src>

<mosaic_0001>
module attributes {stable_mosaic.version = 11 : i64} {
  func.func @ae_encoder_kernel(%arg0: i32, %arg1: memref<8x64xf32, #tpu.memory_space<vmem>>, %arg2: memref<64x128xf32, #tpu.memory_space<vmem>>, %arg3: memref<1x128xf32, #tpu.memory_space<vmem>>, %arg4: memref<128x128xf32, #tpu.memory_space<vmem>>, %arg5: memref<1x128xf32, #tpu.memory_space<vmem>>, %arg6: memref<8x128xf32, #tpu.memory_space<vmem>>) attributes {dimension_semantics = [#tpu.dimension_semantics<parallel>], iteration_bounds = array<i64: 1>, scalar_prefetch = 0 : i64, scratch_operands = 0 : i64, tpu.core_type = #tpu.core_type<tc>, window_params = [{transform_indices = @transform_0, window_bounds = array<i64: 8, 64>}, {pipeline_mode = #tpu.pipeline_mode<synchronous>, transform_indices = @transform_1, window_bounds = array<i64: 64, 128>}, {pipeline_mode = #tpu.pipeline_mode<synchronous>, transform_indices = @transform_2, window_bounds = array<i64: 1, 128>}, {pipeline_mode = #tpu.pipeline_mode<synchronous>, transform_indices = @transform_3, window_bounds = array<i64: 128, 128>}, {pipeline_mode = #tpu.pipeline_mode<synchronous>, transform_indices = @transform_4, window_bounds = array<i64: 1, 128>}, {transform_indices = @transform_5, window_bounds = array<i64: 8, 128>}]} {
    %c0 = arith.constant 0 : index
    %c0_0 = arith.constant 0 : index
    %0 = vector.load %arg1[%c0, %c0_0] : memref<8x64xf32, #tpu.memory_space<vmem>>, vector<8x64xf32>
    %c0_1 = arith.constant 0 : index
    %c0_2 = arith.constant 0 : index
    %1 = vector.load %arg2[%c0_1, %c0_2] : memref<64x128xf32, #tpu.memory_space<vmem>>, vector<64x128xf32>
    %cst = arith.constant dense<0.000000e+00> : vector<8x128xf32>
    %2 = tpu.matmul %0, %1, %cst {dimension_numbers = #tpu.dot_dimension_numbers<[1], [0], [0], [1], [0, 0, 1, 1], [], []>} : vector<8x64xf32>, vector<64x128xf32>, vector<8x128xf32> -> vector<8x128xf32>
    %c0_3 = arith.constant 0 : index
    %c0_4 = arith.constant 0 : index
    %3 = vector.load %arg3[%c0_3, %c0_4] : memref<1x128xf32, #tpu.memory_space<vmem>>, vector<1x128xf32>
    %4 = vector.broadcast %3 : vector<1x128xf32> to vector<8x128xf32>
    %5 = arith.addf %2, %4 : vector<8x128xf32>
    %cst_5 = arith.constant 0.000000e+00 : f32
    %6 = vector.broadcast %cst_5 : f32 to vector<8x128xf32>
    %7 = arith.maximumf %5, %6 : vector<8x128xf32>
    %c0_6 = arith.constant 0 : index
    %c0_7 = arith.constant 0 : index
    %8 = vector.load %arg4[%c0_6, %c0_7] : memref<128x128xf32, #tpu.memory_space<vmem>>, vector<128x128xf32>
    %cst_8 = arith.constant dense<0.000000e+00> : vector<8x128xf32>
    %9 = tpu.matmul %7, %8, %cst_8 {dimension_numbers = #tpu.dot_dimension_numbers<[1], [0], [0], [1], [0, 0, 1, 1], [], []>} : vector<8x128xf32>, vector<128x128xf32>, vector<8x128xf32> -> vector<8x128xf32>
    %c0_9 = arith.constant 0 : index
    %c0_10 = arith.constant 0 : index
    %10 = vector.load %arg5[%c0_9, %c0_10] : memref<1x128xf32, #tpu.memory_space<vmem>>, vector<1x128xf32>
    %11 = vector.broadcast %10 : vector<1x128xf32> to vector<8x128xf32>
    %12 = arith.addf %9, %11 : vector<8x128xf32>
    %cst_11 = arith.constant 0.000000e+00 : f32
    %13 = vector.broadcast %cst_11 : f32 to vector<8x128xf32>
    %14 = arith.maximumf %12, %13 : vector<8x128xf32>
    %c0_12 = arith.constant 0 : index
    %c0_13 = arith.constant 0 : index
    %15 = vector.load %arg6[%c0_12, %c0_13] : memref<8x128xf32, #tpu.memory_space<vmem>>, vector<8x128xf32>
    tpu.vector_store %arg6[%c0_12, %c0_13], %14 {strides = array<i32>} : memref<8x128xf32, #tpu.memory_space<vmem>>, vector<8x128xf32>,
    return
  }
  func.func @transform_0(%arg0: i32) -> (i32, i32) {
    %c0_i32 = arith.constant 0 : i32
    %c0_i32_0 = arith.constant 0 : i32
    return %arg0, %c0_i32 : i32, i32
  }
  func.func @transform_1(%arg0: i32) -> (i32, i32) {
    %c0_i32 = arith.constant 0 : i32
    %c0_i32_0 = arith.constant 0 : i32
    %c0_i32_1 = arith.constant 0 : i32
    return %c0_i32, %c0_i32_0 : i32, i32
  }
  func.func @transform_2(%arg0: i32) -> (i32, i32) {
    %c0_i32 = arith.constant 0 : i32
    %c0_i32_0 = arith.constant 0 : i32
    %c0_i32_1 = arith.constant 0 : i32
    return %c0_i32, %c0_i32_0 : i32, i32
  }
  func.func @transform_3(%arg0: i32) -> (i32, i32) {
    %c0_i32 = arith.constant 0 : i32
    %c0_i32_0 = arith.constant 0 : i32
    %c0_i32_1 = arith.constant 0 : i32
    return %c0_i32, %c0_i32_0 : i32, i32
  }
  func.func @transform_4(%arg0: i32) -> (i32, i32) {
    %c0_i32 = arith.constant 0 : i32
    %c0_i32_0 = arith.constant 0 : i32
    %c0_i32_1 = arith.constant 0 : i32
    return %c0_i32, %c0_i32_0 : i32, i32
  }
  func.func @transform_5(%arg0: i32) -> (i32, i32) {
    %c0_i32 = arith.constant 0 : i32
    %c0_i32_0 = arith.constant 0 : i32
    return %arg0, %c0_i32 : i32, i32
  }
}

</mosaic_0001>

<llo_original>
// kernel: ae_encoder_forward.1
$region0: #{ae_encoder_forward.1}
  #allocation0 [shape = 'u32[]', space=smem, size = 0x4, offset = 0x4, fixed_abs, tag = 'smem constant byte address 0x4 - core index']
  #allocation1 [shape = 'u32[144,128]{1,0:T(1,128)}', space=vmem, size = 0x12000, scoped, tag = 'internal scratch']
  %s0 = inlined_call_operand.vmem [shape: f32[8,64], index: 0, kind: input, shape index: {}]
  %s1 = inlined_call_operand.vmem [shape: f32[64,128], index: 1, kind: input, shape index: {}]
  %s2 = inlined_call_operand.vmem [shape: f32[1,128], index: 2, kind: input, shape index: {}]
  %s3 = inlined_call_operand.vmem [shape: f32[128,128], index: 3, kind: input, shape index: {}]
  %s4 = inlined_call_operand.vmem [shape: f32[1,128], index: 4, kind: input, shape index: {}]
  %s5 = inlined_call_operand.hbm [shape: f32[8,128], index: 5, kind: output, shape index: {}]
  %s6 = sld [smem:[#allocation0]]
  $region30: #{ae_encoder_forward.1} parent=0
    _
  %s8 = ssub.s32 1, %s6
  %s9 = scalar_select 0, %s8, %s6
  $region1: #{ae_encoder_forward.1} parent=0
    #allocation2 [shape = 'u8[4096]{0}', space=vmem, size = 0x1000, scoped, tag = 'output window, operand 0, single buffered']
    #allocation3 [shape = 's32[1]{0}', space=sflag, size = 0x4, scoped, tag = 'scoped memory for ae_encoder_forward.1']
    %10 = vsyncpa [#allocation3], 0
    // Predicated region
    $region2: #{ae_encoder_forward.1} parent=1 // pred_check
      _
    $region3: #{ae_encoder_forward.1} parent=1 // pred_check_branch
      %12 = sbr.rel (0) target = $region5
    $region4: #{ae_encoder_forward.1} parent=1 // pred_region
      _
    $region5: #{ae_encoder_forward.1} parent=1 // pred_fallthru
      _
    // Predicated region
    $region6: #{ae_encoder_forward.1} parent=1 // pred_check
      _
    $region7: #{ae_encoder_forward.1} parent=1 // pred_check_branch
      %14 = sbr.rel (0) target = $region9
    $region8: #{ae_encoder_forward.1} parent=1 // pred_region
      _
    $region9: #{ae_encoder_forward.1} parent=1 // pred_fallthru
      _
    // Predicated region
    $region10: #{ae_encoder_forward.1} parent=1 // pred_check
      _
    $region11: #{ae_encoder_forward.1} parent=1 // pred_check_branch
      %16 = sbr.rel (0) target = $region13
    $region12: #{ae_encoder_forward.1} parent=1 // pred_region
      _
    $region13: #{ae_encoder_forward.1} parent=1 // pred_fallthru
      _
    // Predicated region
    $region14: #{ae_encoder_forward.1} parent=1 // pred_check
      _
    $region15: #{ae_encoder_forward.1} parent=1 // pred_check_branch
      %18 = sbr.rel (0) target = $region17
    $region16: #{ae_encoder_forward.1} parent=1 // pred_region
      _
    $region17: #{ae_encoder_forward.1} parent=1 // pred_fallthru
      _
    // Predicated region
    $region18: #{ae_encoder_forward.1} parent=1 // pred_check
      _
    $region19: #{ae_encoder_forward.1} parent=1 // pred_check_branch
      %20 = sbr.rel (0) target = $region21
    $region20: #{ae_encoder_forward.1} parent=1 // pred_region
      _
    $region21: #{ae_encoder_forward.1} parent=1 // pred_fallthru
      _
    %v21 = vld [vmem:[%s0] sm:$0xff]
    %v22 = vld [vmem:[%s1] sm:$0xff]
    %v23 = vld [vmem:[%s1 + $0x8] sm:$0xff]
    %v24 = vld [vmem:[%s1 + $0x10] sm:$0xff]
    %v25 = vld [vmem:[%s1 + $0x18] sm:$0xff]
    %v26 = vld [vmem:[%s1 + $0x20] sm:$0xff]
    %v27 = vld [vmem:[%s1 + $0x28] sm:$0xff]
    %v28 = vld [vmem:[%s1 + $0x30] sm:$0xff]
    %v29 = vld [vmem:[%s1 + $0x38] sm:$0xff]
    %v30 = vld [vmem:[%s2] sm:$0x1]
    %v32 = vlaneseq
    %v33 = vshrl.u32 %v32, 7
    %v34 = vsub.s32 0, %v33
    %v35 = vrot.slane %v30, %v34
    %vm37 = vcmask 523264
    %v39 = vsel %vm37, %v21, 0
    %41 = vmatprep.subr.mxu0 0.0
    %42 = vmatpush1.msra.mxu0 0.0
    %43 = vmatprep.subr.mxu0 0.0
    %44 = vmatpush1.msra.mxu0 0.0
    %45 = vmatprep.subr.mxu0 0.0
    %46 = vmatpush1.msra.mxu0 0.0
    %47 = vmatprep.subr.mxu0 0.0
    %48 = vmatpush1.msra.mxu0 0.0
    %49 = vmatprep.subr.mxu0 0.0
    %50 = vmatpush1.msra.mxu0 0.0
    %51 = vmatprep.subr.mxu0 0.0
    %52 = vmatpush1.msra.mxu0 0.0
    %53 = vmatprep.subr.mxu0 0.0
    %54 = vmatpush1.msra.mxu0 0.0
    %55 = vmatprep.subr.mxu0 0.0
    %56 = vmatpush1.msra.mxu0 0.0
    %57 = vmatprep.subr.mxu0 0.0
    %58 = vmatpush1.msra.mxu0 %v29
    %59 = vmatprep.subr.mxu0 0.0
    %60 = vmatpush1.msra.mxu0 %v28
    %61 = vmatprep.subr.mxu0 0.0
    %62 = vmatpush1.msra.mxu0 %v27
    %63 = vmatprep.subr.mxu0 0.0
    %64 = vmatpush1.msra.mxu0 %v26
    %65 = vmatprep.subr.mxu0 0.0
    %66 = vmatpush1.msra.mxu0 %v25
    %67 = vmatprep.subr.mxu0 0.0
    %68 = vmatpush1.msra.mxu0 %v24
    %69 = vmatprep.subr.mxu0 0.0
    %70 = vmatpush1.msra.mxu0 %v23
    %71 = vmatprep.subr.mxu0 0.0
    %72 = vmatpush1.msra.mxu0 %v22
    %73 = vmatprep.subr.mxu0 0.0
    %74 = vmatpush2.msra.mxu0 0.0
    %75 = vmatprep.subr.mxu0 0.0
    %76 = vmatpush2.msra.mxu0 0.0
    %77 = vmatprep.subr.mxu0 0.0
    %78 = vmatpush2.msra.mxu0 0.0
    %79 = vmatprep.subr.mxu0 0.0
    %80 = vmatpush2.msra.mxu0 0.0
    %81 = vmatprep.subr.mxu0 0.0
    %82 = vmatpush2.msra.mxu0 0.0
    %83 = vmatprep.subr.mxu0 0.0
    %84 = vmatpush2.msra.mxu0 0.0
    %85 = vmatprep.subr.mxu0 0.0
    %86 = vmatpush2.msra.mxu0 0.0
    %87 = vmatprep.subr.mxu0 0.0
    %88 = vmatpush2.msra.mxu0 0.0
    %89 = vmatprep.subr.mxu0 0.0
    %90 = vmatpush2.msra.mxu0 0.0
    %91 = vmatprep.subr.mxu0 0.0
    %92 = vmatpush2.msra.mxu0 0.0
    %93 = vmatprep.subr.mxu0 0.0
    %94 = vmatpush2.msra.mxu0 0.0
    %95 = vmatprep.subr.mxu0 0.0
    %96 = vmatpush2.msra.mxu0 0.0
    %97 = vmatprep.subr.mxu0 0.0
    %98 = vmatpush2.msra.mxu0 0.0
    %99 = vmatprep.subr.mxu0 0.0
    %100 = vmatpush2.msra.mxu0 0.0
    %101 = vmatprep.subr.mxu0 0.0
    %102 = vmatpush2.msra.mxu0 0.0
    %103 = vmatprep.subr.mxu0 0.0
    %104 = vmatpush2.msra.mxu0 0.0
    %105 = vmatprep.mubr.f32.mxu0 0.0
    %106 = vmatmul.mubr.f32.gmra.mxu0 %v39
    %v107 = vpop.f32.mrf.mxu0
    %v108 = vadd.f32 %v35, %v107
    %v109 = vpop.f32.mrf.mxu0
    %110 = vdwg.mxu0
    %v111 = vmax.f32 %v108, 0.0
    %v112 = vld [vmem:[%s3] sm:$0xff]
    %v113 = vld [vmem:[%s3 + $0x8] sm:$0xff]
    %v114 = vld [vmem:[%s3 + $0x10] sm:$0xff]
    %v115 = vld [vmem:[%s3 + $0x18] sm:$0xff]
    %v116 = vld [vmem:[%s3 + $0x20] sm:$0xff]
    %v117 = vld [vmem:[%s3 + $0x28] sm:$0xff]
    %v118 = vld [vmem:[%s3 + $0x30] sm:$0xff]
    %v119 = vld [vmem:[%s3 + $0x38] sm:$0xff]
    %v120 = vld [vmem:[%s3 + $0x40] sm:$0xff]
    %v121 = vld [vmem:[%s3 + $0x48] sm:$0xff]
    %v122 = vld [vmem:[%s3 + $0x50] sm:$0xff]
    %v123 = vld [vmem:[%s3 + $0x58] sm:$0xff]
    %v124 = vld [vmem:[%s3 + $0x60] sm:$0xff]
    %v125 = vld [vmem:[%s3 + $0x68] sm:$0xff]
    %v126 = vld [vmem:[%s3 + $0x70] sm:$0xff]
    %v127 = vld [vmem:[%s3 + $0x78] sm:$0xff]
    %v128 = vld [vmem:[%s4] sm:$0x1]
    %v130 = vlaneseq
    %v131 = vshrl.u32 %v130, 7
    %v132 = vsub.s32 0, %v131
    %v133 = vrot.slane %v128, %v132
    %135 = vmatprep.subr.mxu0 0.0
    %136 = vmatpush1.msra.mxu0 %v127
    %137 = vmatprep.subr.mxu0 0.0
    %138 = vmatpush1.msra.mxu0 %v126
    %139 = vmatprep.subr.mxu0 0.0
    %140 = vmatpush1.msra.mxu0 %v125
    %141 = vmatprep.subr.mxu0 0.0
    %142 = vmatpush1.msra.mxu0 %v124
    %143 = vmatprep.subr.mxu0 0.0
    %144 = vmatpush1.msra.mxu0 %v123
    %145 = vmatprep.subr.mxu0 0.0
    %146 = vmatpush1.msra.mxu0 %v122
    %147 = vmatprep.subr.mxu0 0.0
    %148 = vmatpush1.msra.mxu0 %v121
    %149 = vmatprep.subr.mxu0 0.0
    %150 = vmatpush1.msra.mxu0 %v120
    %151 = vmatprep.subr.mxu0 0.0
    %152 = vmatpush1.msra.mxu0 %v119
    %153 = vmatprep.subr.mxu0 0.0
    %154 = vmatpush1.msra.mxu0 %v118
    %155 = vmatprep.subr.mxu0 0.0
    %156 = vmatpush1.msra.mxu0 %v117
    %157 = vmatprep.subr.mxu0 0.0
    %158 = vmatpush1.msra.mxu0 %v116
    %159 = vmatprep.subr.mxu0 0.0
    %160 = vmatpush1.msra.mxu0 %v115
    %161 = vmatprep.subr.mxu0 0.0
    %162 = vmatpush1.msra.mxu0 %v114
    %163 = vmatprep.subr.mxu0 0.0
    %164 = vmatpush1.msra.mxu0 %v113
    %165 = vmatprep.subr.mxu0 0.0
    %166 = vmatpush1.msra.mxu0 %v112
    %167 = vmatprep.subr.mxu0 0.0
    %168 = vmatpush2.msra.mxu0 0.0
    %169 = vmatprep.subr.mxu0 0.0
    %170 = vmatpush2.msra.mxu0 0.0
    %171 = vmatprep.subr.mxu0 0.0
    %172 = vmatpush2.msra.mxu0 0.0
    %173 = vmatprep.subr.mxu0 0.0
    %174 = vmatpush2.msra.mxu0 0.0
    %175 = vmatprep.subr.mxu0 0.0
    %176 = vmatpush2.msra.mxu0 0.0
    %177 = vmatprep.subr.mxu0 0.0
    %178 = vmatpush2.msra.mxu0 0.0
    %179 = vmatprep.subr.mxu0 0.0
    %180 = vmatpush2.msra.mxu0 0.0
    %181 = vmatprep.subr.mxu0 0.0
    %182 = vmatpush2.msra.mxu0 0.0
    %183 = vmatprep.subr.mxu0 0.0
    %184 = vmatpush2.msra.mxu0 0.0
    %185 = vmatprep.subr.mxu0 0.0
    %186 = vmatpush2.msra.mxu0 0.0
    %187 = vmatprep.subr.mxu0 0.0
    %188 = vmatpush2.msra.mxu0 0.0
    %189 = vmatprep.subr.mxu0 0.0
    %190 = vmatpush2.msra.mxu0 0.0
    %191 = vmatprep.subr.mxu0 0.0
    %192 = vmatpush2.msra.mxu0 0.0
    %193 = vmatprep.subr.mxu0 0.0
    %194 = vmatpush2.msra.mxu0 0.0
    %195 = vmatprep.subr.mxu0 0.0
    %196 = vmatpush2.msra.mxu0 0.0
    %197 = vmatprep.subr.mxu0 0.0
    %198 = vmatpush2.msra.mxu0 0.0
    %199 = vmatprep.mubr.f32.mxu0 0.0
    %200 = vmatmul.mubr.f32.gmra.mxu0 %v111
    %v201 = vpop.f32.mrf.mxu0
    %v202 = vadd.f32 %v133, %v201
    %v203 = vpop.f32.mrf.mxu0
    %204 = vdwg.mxu0
    %v205 = vmax.f32 %v202, 0.0
    %206 = vst [vmem:[#allocation2] sm:$0xff] %v205
    // Predicated region
    $region22: #{ae_encoder_forward.1} parent=1 // pred_check
      _
    $region23: #{ae_encoder_forward.1} parent=1 // pred_check_branch
      %208 = sbr.rel (0) target = $region25
    $region24: #{ae_encoder_forward.1} parent=1 // pred_region
      %s210 = ssub.s32 128, 128
      %211 = vsyncadd [#allocation3], %s210
      %s213 = sshll.u32 [#allocation2], 4
      %s214 = int_to_ptr.vmem [resolvable:$true] %s213
      %216 = dma.vmem_to_hbm [thread:$0]  %s214, 128, %s5, [#allocation3]
    $region25: #{ae_encoder_forward.1} parent=1 // pred_fallthru
      _
    // Predicated region
    $region26: #{ae_encoder_forward.1} parent=1 // pred_check
      _
    $region27: #{ae_encoder_forward.1} parent=1 // pred_check_branch
      %218 = sbr.rel (0) target = $region29
    $region28: #{ae_encoder_forward.1} parent=1 // pred_region
      %219 = dma.done [#allocation3], 128
    $region29: #{ae_encoder_forward.1} parent=1 // pred_fallthru
      _
    %220 = vsyncpa [#allocation3], 1

</llo_original>
